<compile_context>
chip_gen: v7x
topology: tpu7x:2x2x1
jax: 0.10.0
libtpu: 0.0.40
codegen_flags: <defaults>
</compile_context>

<pallas_src>
import functools

import jax
import jax.numpy as jnp
from jax.experimental import pallas as pl
from jax.experimental.pallas import tpu as pltpu


_NEG_BIG = -1.0e30  # finite "-inf" for padded logit columns (exp underflows to 0)


def _round_up(x, m):
    return (x + m - 1) // m * m


def _choose_batch_tile(B):
    """16-aligned batch tile; near-equal tiles; >=2 grid steps when B allows."""
    B16 = _round_up(B, 16)
    if B16 <= 32:
        return B16                       # single small tile; nothing to split
    max_tb = 512                         # ~85% HBM roofline territory, tiny VMEM
    n_tiles = max(2, -(-B16 // max_tb))  # >=2 steps -> v7x dual-TC split
    tb = _round_up(-(-B16 // n_tiles), 16)
    return min(tb, max_tb)


def _mlp_kernel(x_ref, w1_ref, b1_ref, w3_ref, b3_ref, probs_ref):
    # x_ref : (TB, Dp) f32     w1_ref: (Dp, Hp) bf16    b1_ref: (1, Hp) f32
    # w3_ref: (Hp, Op) f32     b3_ref: (1, Op)  f32 (padded cols = -1e30)
    # probs_ref: (TB, Op) f32  -- lane-dense (Op multiple of 128)

    # fc1 + relu: cast x to bf16 in-kernel (hides under DMA), MXU matmul with
    # f32 accumulation; elementwise math stays f32.
    x_bf = x_ref[...].astype(jnp.bfloat16)
    h = jnp.dot(x_bf, w1_ref[...], preferred_element_type=jnp.float32)
    h = jnp.maximum(h + b1_ref[...], 0.0)

    # fc3 -> logits (tiny K=Hp, N=Op matmul, kept f32 for accuracy). Padded
    # logit columns carry -1e30 from b3 so they can't win argmax nor contribute
    # to the softmax denominator.
    logits = jnp.dot(h, w3_ref[...], preferred_element_type=jnp.float32) + b3_ref[...]

    # Numerically-stable softmax, single chained store (only output).
    m = jnp.max(logits, axis=-1, keepdims=True)
    e = jnp.exp(logits - m)
    denom = jnp.sum(e, axis=-1, keepdims=True)
    probs_ref[...] = e * pl.reciprocal(denom, approx=False)


def prepare_mlp_params(w1, b1, w3, b3):
    """One-time padding/casting of weights (out of the per-call path).

    Weights stored as (in, out) == torch W.T. Padded to 128-multiples;
    w1 cast to bf16; b3 padded columns set to -1e30.
    """
    D, H = w1.shape
    O = w3.shape[1]
    Dp, Hp, Op = _round_up(D, 128), _round_up(H, 128), _round_up(O, 128)

    w1_p = jnp.zeros((Dp, Hp), jnp.float32).at[:D, :H].set(w1).astype(jnp.bfloat16)
    b1_p = jnp.zeros((1, Hp), jnp.float32).at[0, :H].set(b1)
    w3_p = jnp.zeros((Hp, Op), jnp.float32).at[:H, :O].set(w3)
    b3_p = jnp.full((1, Op), _NEG_BIG, jnp.float32).at[0, :O].set(b3)
    return w1_p, b1_p, w3_p, b3_p, O


@functools.partial(jax.jit, static_argnames=("output_dim",))
def mlp_forward(x_nchw, w1_p, b1_p, w3_p, b3_p, *, output_dim):
    """x_nchw: (B, C, H, W) f32. Weights pre-padded via prepare_mlp_params.

    Returns (argmax int32 (B,), probs f32 (B, output_dim)) matching torch.
    TODO(synk): torch returns int64 argmax; int32 kept (x64 disabled by default).
    """
    B = x_nchw.shape[0]
    x2d = x_nchw.reshape(B, -1).astype(jnp.float32)  # torch.flatten(x, start_dim=1)
    D = x2d.shape[1]
    Dp, Hp = w1_p.shape
    Op = w3_p.shape[1]
    O = output_dim

    TB = _choose_batch_tile(B)
    Bp = _round_up(B, TB)

    # Pad x only if needed (f32; bf16 cast happens inside the kernel).
    if B == Bp and D == Dp:
        x_p = x2d
    else:
        x_p = jnp.zeros((Bp, Dp), jnp.float32).at[:B, :D].set(x2d)

    cost = pl.CostEstimate(
        flops=2 * Bp * Dp * Hp + 2 * Bp * Hp * Op,
        transcendentals=Bp * Op,
        bytes_accessed=(Bp * Dp * 4            # x (f32, read once)
                        + Dp * Hp * 2          # w1 (bf16)
                        + Hp * 4 + Hp * Op * 4 + Op * 4
                        + Bp * Op * 4),        # probs (only output)
    )

    probs_p = pl.pallas_call(
        _mlp_kernel,
        out_shape=jax.ShapeDtypeStruct((Bp, Op), jnp.float32),
        grid=(Bp // TB,),
        in_specs=[
            pl.BlockSpec((TB, Dp), lambda i: (i, 0)),   # x tiles stream over batch
            pl.BlockSpec((Dp, Hp), lambda i: (0, 0)),   # weights stay VMEM-resident
            pl.BlockSpec((1, Hp), lambda i: (0, 0)),
            pl.BlockSpec((Hp, Op), lambda i: (0, 0)),
            pl.BlockSpec((1, Op), lambda i: (0, 0)),
        ],
        out_specs=pl.BlockSpec((TB, Op), lambda i: (i, 0)),
        compiler_params=pltpu.CompilerParams(
            dimension_semantics=("parallel",),          # megacore / v7x dual-TC split
        ),
        cost_estimate=cost,
    )(x_p, w1_p, b1_p, w3_p, b3_p)

    probs = probs_p[:B, :O]
    # softmax is monotone -> argmax(probs) == argmax(logits); padded columns are
    # exactly 0 in probs so they never win.
    argmax = jnp.argmax(probs, axis=-1).astype(jnp.int32)
    return argmax, probs


def init_linear_params(key, in_features, out_features):
    """Deterministic init mimicking torch.nn.Linear (uniform +-1/sqrt(fan_in))."""
    k_w, k_b = jax.random.split(key)
    bound = 1.0 / jnp.sqrt(jnp.float32(in_features))
    # Stored as (in, out) so kernel can do x @ W (== torch's x @ W.T).
    w = jax.random.uniform(k_w, (in_features, out_features), jnp.float32, -bound, bound)
    b = jax.random.uniform(k_b, (out_features,), jnp.float32, -bound, bound)
    return w, b


if __name__ == "__main__":
    # Small shapes consistent with the module:
    #   x: (2, 4, 16, 16) -> flatten -> input_dim = 1024
    #   hidden_dim = 32, output_dim = 10
    B, C, Himg, Wimg = 2, 4, 16, 16
    input_dim = C * Himg * Wimg
    hidden_dim = 32
    output_dim = 10

    key = jax.random.PRNGKey(0)
    kx, k1, k3 = jax.random.split(key, 3)

    x = jax.random.normal(kx, (B, C, Himg, Wimg), jnp.float32)
    w1, b1 = init_linear_params(k1, input_dim, hidden_dim)
    w3, b3 = init_linear_params(k3, hidden_dim, output_dim)

    # One-time weight padding/casting (hoisted out of the per-call path).
    w1_p, b1_p, w3_p, b3_p, out_dim = prepare_mlp_params(w1, b1, w3, b3)

    argmax_out, probs_out = mlp_forward(x, w1_p, b1_p, w3_p, b3_p,
                                        output_dim=out_dim)
    jax.block_until_ready((argmax_out, probs_out))

    # Sanity check against a pure-JAX reference. The reference mirrors the
    # kernel's bf16 fc1 inputs (exact bf16 products, f32 accumulate), so the
    # comparison isolates Pallas correctness rather than bf16 rounding.
    x2d = x.reshape(B, -1)
    x_q = x2d.astype(jnp.bfloat16).astype(jnp.float32)
    w1_q = w1.astype(jnp.bfloat16).astype(jnp.float32)
    h_ref = jnp.maximum(x_q @ w1_q + b1, 0.0)
    logits_ref = h_ref @ w3 + b3
    ref_argmax = jnp.argmax(logits_ref, axis=-1).astype(jnp.int32)
    ref_probs = jax.nn.softmax(logits_ref, axis=-1)

    assert argmax_out.shape == (B,) and probs_out.shape == (B, output_dim)
    assert jnp.array_equal(argmax_out, ref_argmax), "argmax mismatch"
    assert jnp.allclose(probs_out, ref_probs, atol=2e-5, rtol=2e-5), "softmax mismatch"

    print("KERNEL_OK")
</pallas_src>

<mosaic_0001>
module attributes {stable_mosaic.version = 11 : i64} {
  func.func @_mlp_kernel(%arg0: i32, %arg1: memref<16x1024xf32, #tpu.memory_space<vmem>>, %arg2: memref<1024x128xbf16, #tpu.memory_space<vmem>>, %arg3: memref<1x128xf32, #tpu.memory_space<vmem>>, %arg4: memref<128x128xf32, #tpu.memory_space<vmem>>, %arg5: memref<1x128xf32, #tpu.memory_space<vmem>>, %arg6: memref<16x128xf32, #tpu.memory_space<vmem>>) attributes {dimension_semantics = [#tpu.dimension_semantics<parallel>], iteration_bounds = array<i64: 1>, scalar_prefetch = 0 : i64, scratch_operands = 0 : i64, tpu.core_type = #tpu.core_type<tc>, window_params = [{transform_indices = @transform_0, window_bounds = array<i64: 16, 1024>}, {pipeline_mode = #tpu.pipeline_mode<synchronous>, transform_indices = @transform_1, window_bounds = array<i64: 1024, 128>}, {pipeline_mode = #tpu.pipeline_mode<synchronous>, transform_indices = @transform_2, window_bounds = array<i64: 1, 128>}, {pipeline_mode = #tpu.pipeline_mode<synchronous>, transform_indices = @transform_3, window_bounds = array<i64: 128, 128>}, {pipeline_mode = #tpu.pipeline_mode<synchronous>, transform_indices = @transform_4, window_bounds = array<i64: 1, 128>}, {transform_indices = @transform_5, window_bounds = array<i64: 16, 128>}]} {
    %c0 = arith.constant 0 : index
    %c0_0 = arith.constant 0 : index
    %0 = vector.load %arg1[%c0, %c0_0] : memref<16x1024xf32, #tpu.memory_space<vmem>>, vector<16x1024xf32>
    %1 = arith.truncf %0 : vector<16x1024xf32> to vector<16x1024xbf16>
    %c0_1 = arith.constant 0 : index
    %c0_2 = arith.constant 0 : index
    %2 = vector.load %arg2[%c0_1, %c0_2] : memref<1024x128xbf16, #tpu.memory_space<vmem>>, vector<1024x128xbf16>
    %cst = arith.constant dense<0.000000e+00> : vector<16x128xf32>
    %3 = tpu.matmul %1, %2, %cst {dimension_numbers = #tpu.dot_dimension_numbers<[1], [0], [0], [1], [0, 0, 1, 1], [], []>} : vector<16x1024xbf16>, vector<1024x128xbf16>, vector<16x128xf32> -> vector<16x128xf32>
    %c0_3 = arith.constant 0 : index
    %c0_4 = arith.constant 0 : index
    %4 = vector.load %arg3[%c0_3, %c0_4] : memref<1x128xf32, #tpu.memory_space<vmem>>, vector<1x128xf32>
    %5 = vector.broadcast %4 : vector<1x128xf32> to vector<16x128xf32>
    %6 = arith.addf %3, %5 : vector<16x128xf32>
    %cst_5 = arith.constant 0.000000e+00 : f32
    %7 = vector.broadcast %cst_5 : f32 to vector<16x128xf32>
    %8 = arith.maximumf %6, %7 : vector<16x128xf32>
    %c0_6 = arith.constant 0 : index
    %c0_7 = arith.constant 0 : index
    %9 = vector.load %arg4[%c0_6, %c0_7] : memref<128x128xf32, #tpu.memory_space<vmem>>, vector<128x128xf32>
    %cst_8 = arith.constant dense<0.000000e+00> : vector<16x128xf32>
    %10 = tpu.matmul %8, %9, %cst_8 {dimension_numbers = #tpu.dot_dimension_numbers<[1], [0], [0], [1], [0, 0, 1, 1], [], []>} : vector<16x128xf32>, vector<128x128xf32>, vector<16x128xf32> -> vector<16x128xf32>
    %c0_9 = arith.constant 0 : index
    %c0_10 = arith.constant 0 : index
    %11 = vector.load %arg5[%c0_9, %c0_10] : memref<1x128xf32, #tpu.memory_space<vmem>>, vector<1x128xf32>
    %12 = vector.broadcast %11 : vector<1x128xf32> to vector<16x128xf32>
    %13 = arith.addf %10, %12 : vector<16x128xf32>
    %cst_11 = arith.constant dense<0xFF800000> : vector<16xf32>
    %14 = vector.multi_reduction <maximumf>, %13, %cst_11 [1] : vector<16x128xf32> to vector<16xf32>
    %15 = vector.shape_cast %14 : vector<16xf32> to vector<16x1xf32>
    %16 = vector.broadcast %15 : vector<16x1xf32> to vector<16x128xf32>
    %17 = arith.subf %13, %16 : vector<16x128xf32>
    %18 = math.exp %17 : vector<16x128xf32>
    %cst_12 = arith.constant dense<0.000000e+00> : vector<16xf32>
    %19 = vector.multi_reduction <add>, %18, %cst_12 [1] : vector<16x128xf32> to vector<16xf32>
    %20 = vector.shape_cast %19 : vector<16xf32> to vector<16x1xf32>
    %21 = tpu.reciprocal %20 : vector<16x1xf32> -> vector<16x1xf32>
    %22 = vector.broadcast %21 : vector<16x1xf32> to vector<16x128xf32>
    %23 = arith.mulf %18, %22 : vector<16x128xf32>
    %c0_13 = arith.constant 0 : index
    %c0_14 = arith.constant 0 : index
    %24 = vector.load %arg6[%c0_13, %c0_14] : memref<16x128xf32, #tpu.memory_space<vmem>>, vector<16x128xf32>
    tpu.vector_store %arg6[%c0_13, %c0_14], %23 {strides = array<i32>} : memref<16x128xf32, #tpu.memory_space<vmem>>, vector<16x128xf32>,
    return
  }
  func.func @transform_0(%arg0: i32) -> (i32, i32) {
    %c0_i32 = arith.constant 0 : i32
    %c0_i32_0 = arith.constant 0 : i32
    return %arg0, %c0_i32 : i32, i32
  }
  func.func @transform_1(%arg0: i32) -> (i32, i32) {
    %c0_i32 = arith.constant 0 : i32
    %c0_i32_0 = arith.constant 0 : i32
    %c0_i32_1 = arith.constant 0 : i32
    return %c0_i32, %c0_i32_0 : i32, i32
  }
  func.func @transform_2(%arg0: i32) -> (i32, i32) {
    %c0_i32 = arith.constant 0 : i32
    %c0_i32_0 = arith.constant 0 : i32
    %c0_i32_1 = arith.constant 0 : i32
    return %c0_i32, %c0_i32_0 : i32, i32
  }
  func.func @transform_3(%arg0: i32) -> (i32, i32) {
    %c0_i32 = arith.constant 0 : i32
    %c0_i32_0 = arith.constant 0 : i32
    %c0_i32_1 = arith.constant 0 : i32
    return %c0_i32, %c0_i32_0 : i32, i32
  }
  func.func @transform_4(%arg0: i32) -> (i32, i32) {
    %c0_i32 = arith.constant 0 : i32
    %c0_i32_0 = arith.constant 0 : i32
    %c0_i32_1 = arith.constant 0 : i32
    return %c0_i32, %c0_i32_0 : i32, i32
  }
  func.func @transform_5(%arg0: i32) -> (i32, i32) {
    %c0_i32 = arith.constant 0 : i32
    %c0_i32_0 = arith.constant 0 : i32
    return %arg0, %c0_i32 : i32, i32
  }
}

</mosaic_0001>

<llo_original>
// kernel: mlp_forward.1
$region0: #{mlp_forward.1}
  #allocation0 [shape = 'u32[]', space=smem, size = 0x4, offset = 0x4, fixed_abs, tag = 'smem constant byte address 0x4 - core index']
  #allocation1 [shape = 'u32[144,128]{1,0:T(1,128)}', space=vmem, size = 0x12000, scoped, tag = 'internal scratch']
  %s0 = inlined_call_operand.vmem [shape: f32[16,1024], index: 0, kind: input, shape index: {}]
  %s1 = inlined_call_operand.hbm [shape: bf16[1024,128], index: 1, kind: input, shape index: {}]
  %s2 = inlined_call_operand.vmem [shape: f32[1,128], index: 2, kind: input, shape index: {}]
  %s3 = inlined_call_operand.vmem [shape: f32[128,128], index: 3, kind: input, shape index: {}]
  %s4 = inlined_call_operand.vmem [shape: f32[1,128], index: 4, kind: input, shape index: {}]
  %s5 = inlined_call_operand.vmem [shape: f32[16,128], index: 5, kind: output, shape index: {}]
  %s6 = sld [smem:[#allocation0]]
  $region34: #{mlp_forward.1} parent=0
    _
  %s8 = ssub.s32 1, %s6
  %s9 = scalar_select 0, %s8, %s6
  $region1: #{mlp_forward.1} parent=0
    #allocation2 [shape = 'u8[262144]{0}', space=vmem, size = 0x40000, scoped, tag = 'input window, operand 1, single buffered']
    #allocation3 [shape = 's32[1]{0}', space=sflag, size = 0x4, scoped, tag = 'scoped memory for mlp_forward.1']
    %10 = vsyncpa [#allocation3], 0
    // Predicated region
    $region2: #{mlp_forward.1} parent=1 // pred_check
      _
    $region3: #{mlp_forward.1} parent=1 // pred_check_branch
      %12 = sbr.rel (0) target = $region5
    $region4: #{mlp_forward.1} parent=1 // pred_region
      _
    $region5: #{mlp_forward.1} parent=1 // pred_fallthru
      _
    // Predicated region
    $region6: #{mlp_forward.1} parent=1 // pred_check
      _
    $region7: #{mlp_forward.1} parent=1 // pred_check_branch
      %14 = sbr.rel (0) target = $region9
    $region8: #{mlp_forward.1} parent=1 // pred_region
      %s16 = ssub.s32 8192, 8192
      %17 = vsyncadd [#allocation3], %s16
      %s18 = sshll.u32 [#allocation2], 4
      %s19 = int_to_ptr.vmem [resolvable:$true] %s18
      %24 = dma.hbm_to_vmem [thread:$0]  %s1, 8192, %s19, [#allocation3], 64, 64, 4
    $region9: #{mlp_forward.1} parent=1 // pred_fallthru
      _
    // Predicated region
    $region10: #{mlp_forward.1} parent=1 // pred_check
      _
    $region11: #{mlp_forward.1} parent=1 // pred_check_branch
      %26 = sbr.rel (0) target = $region13
    $region12: #{mlp_forward.1} parent=1 // pred_region
      _
    $region13: #{mlp_forward.1} parent=1 // pred_fallthru
      _
    // Predicated region
    $region14: #{mlp_forward.1} parent=1 // pred_check
      _
    $region15: #{mlp_forward.1} parent=1 // pred_check_branch
      %28 = sbr.rel (0) target = $region17
    $region16: #{mlp_forward.1} parent=1 // pred_region
      _
    $region17: #{mlp_forward.1} parent=1 // pred_fallthru
      _
    // Predicated region
    $region18: #{mlp_forward.1} parent=1 // pred_check
      _
    $region19: #{mlp_forward.1} parent=1 // pred_check_branch
      %30 = sbr.rel (0) target = $region21
    $region20: #{mlp_forward.1} parent=1 // pred_region
      _
    $region21: #{mlp_forward.1} parent=1 // pred_fallthru
      _
    // Predicated region
    $region22: #{mlp_forward.1} parent=1 // pred_check
      _
    $region23: #{mlp_forward.1} parent=1 // pred_check_branch
      %32 = sbr.rel (0) target = $region25
    $region24: #{mlp_forward.1} parent=1 // pred_region
      %33 = dma.done [#allocation3], 8192
    $region25: #{mlp_forward.1} parent=1 // pred_fallthru
      _
    %v35 = vld [vmem:[%s0] sm:$0xff]
    %v36 = vld [vmem:[%s0 + $0x8] sm:$0xff]
    %v37 = vld [vmem:[%s0 + $0x10] sm:$0xff]
    %v38 = vld [vmem:[%s0 + $0x18] sm:$0xff]
    %v39 = vld [vmem:[%s0 + $0x20] sm:$0xff]
    %v40 = vld [vmem:[%s0 + $0x28] sm:$0xff]
    %v41 = vld [vmem:[%s0 + $0x30] sm:$0xff]
    %v42 = vld [vmem:[%s0 + $0x38] sm:$0xff]
    %v43 = vld [vmem:[%s0 + $0x40] sm:$0xff]
    %v44 = vld [vmem:[%s0 + $0x48] sm:$0xff]
    %v45 = vld [vmem:[%s0 + $0x50] sm:$0xff]
    %v46 = vld [vmem:[%s0 + $0x58] sm:$0xff]
    %v47 = vld [vmem:[%s0 + $0x60] sm:$0xff]
    %v48 = vld [vmem:[%s0 + $0x68] sm:$0xff]
    %v49 = vld [vmem:[%s0 + $0x70] sm:$0xff]
    %v50 = vld [vmem:[%s0 + $0x78] sm:$0xff]
    %v51 = vpack.c.bf16 %v43, %v35
    %v52 = vpack.c.bf16 %v44, %v36
    %v53 = vpack.c.bf16 %v45, %v37
    %v54 = vpack.c.bf16 %v46, %v38
    %v55 = vpack.c.bf16 %v47, %v39
    %v56 = vpack.c.bf16 %v48, %v40
    %v57 = vpack.c.bf16 %v49, %v41
    %v58 = vpack.c.bf16 %v50, %v42
    %v59 = vld [vmem:[#allocation2] sm:$0xf]
    %v60 = vld [vmem:[#allocation2 + $0x4] sm:$0xf]
    %v61 = vld [vmem:[#allocation2 + $0x8] sm:$0xf]
    %v62 = vld [vmem:[#allocation2 + $0xc] sm:$0xf]
    %v63 = vld [vmem:[#allocation2 + $0x10] sm:$0xf]
    %v64 = vld [vmem:[#allocation2 + $0x14] sm:$0xf]
    %v65 = vld [vmem:[#allocation2 + $0x18] sm:$0xf]
    %v66 = vld [vmem:[#allocation2 + $0x1c] sm:$0xf]
    %v67 = vld [vmem:[#allocation2 + $0x20] sm:$0xf]
    %v68 = vld [vmem:[#allocation2 + $0x24] sm:$0xf]
    %v69 = vld [vmem:[#allocation2 + $0x28] sm:$0xf]
    %v70 = vld [vmem:[#allocation2 + $0x2c] sm:$0xf]
    %v71 = vld [vmem:[#allocation2 + $0x30] sm:$0xf]
    %v72 = vld [vmem:[#allocation2 + $0x34] sm:$0xf]
    %v73 = vld [vmem:[#allocation2 + $0x38] sm:$0xf]
    %v74 = vld [vmem:[#allocation2 + $0x3c] sm:$0xf]
    %v75 = vld [vmem:[#allocation2 + $0x40] sm:$0xf]
    %v76 = vld [vmem:[#allocation2 + $0x44] sm:$0xf]
    %v77 = vld [vmem:[#allocation2 + $0x48] sm:$0xf]
    %v78 = vld [vmem:[#allocation2 + $0x4c] sm:$0xf]
    %v79 = vld [vmem:[#allocation2 + $0x50] sm:$0xf]
    %v80 = vld [vmem:[#allocation2 + $0x54] sm:$0xf]
    %v81 = vld [vmem:[#allocation2 + $0x58] sm:$0xf]
    %v82 = vld [vmem:[#allocation2 + $0x5c] sm:$0xf]
    %v83 = vld [vmem:[#allocation2 + $0x60] sm:$0xf]
    %v84 = vld [vmem:[#allocation2 + $0x64] sm:$0xf]
    %v85 = vld [vmem:[#allocation2 + $0x68] sm:$0xf]
    %v86 = vld [vmem:[#allocation2 + $0x6c] sm:$0xf]
    %v87 = vld [vmem:[#allocation2 + $0x70] sm:$0xf]
    %v88 = vld [vmem:[#allocation2 + $0x74] sm:$0xf]
    %v89 = vld [vmem:[#allocation2 + $0x78] sm:$0xf]
    %v90 = vld [vmem:[#allocation2 + $0x7c] sm:$0xf]
    %v91 = vld [vmem:[#allocation2 + $0x80] sm:$0xf]
    %v92 = vld [vmem:[#allocation2 + $0x84] sm:$0xf]
    %v93 = vld [vmem:[#allocation2 + $0x88] sm:$0xf]
    %v94 = vld [vmem:[#allocation2 + $0x8c] sm:$0xf]
    %v95 = vld [vmem:[#allocation2 + $0x90] sm:$0xf]
    %v96 = vld [vmem:[#allocation2 + $0x94] sm:$0xf]
    %v97 = vld [vmem:[#allocation2 + $0x98] sm:$0xf]
    %v98 = vld [vmem:[#allocation2 + $0x9c] sm:$0xf]
    %v99 = vld [vmem:[#allocation2 + $0xa0] sm:$0xf]
    %v100 = vld [vmem:[#allocation2 + $0xa4] sm:$0xf]
    %v101 = vld [vmem:[#allocation2 + $0xa8] sm:$0xf]
    %v102 = vld [vmem:[#allocation2 + $0xac] sm:$0xf]
    %v103 = vld [vmem:[#allocation2 + $0xb0] sm:$0xf]
    %v104 = vld [vmem:[#allocation2 + $0xb4] sm:$0xf]
    %v105 = vld [vmem:[#allocation2 + $0xb8] sm:$0xf]
    %v106 = vld [vmem:[#allocation2 + $0xbc] sm:$0xf]
    %v107 = vld [vmem:[#allocation2 + $0xc0] sm:$0xf]
    %v108 = vld [vmem:[#allocation2 + $0xc4] sm:$0xf]
    %v109 = vld [vmem:[#allocation2 + $0xc8] sm:$0xf]
    %v110 = vld [vmem:[#allocation2 + $0xcc] sm:$0xf]
    %v111 = vld [vmem:[#allocation2 + $0xd0] sm:$0xf]
    %v112 = vld [vmem:[#allocation2 + $0xd4] sm:$0xf]
    %v113 = vld [vmem:[#allocation2 + $0xd8] sm:$0xf]
    %v114 = vld [vmem:[#allocation2 + $0xdc] sm:$0xf]
    %v115 = vld [vmem:[#allocation2 + $0xe0] sm:$0xf]
    %v116 = vld [vmem:[#allocation2 + $0xe4] sm:$0xf]
    %v117 = vld [vmem:[#allocation2 + $0xe8] sm:$0xf]
    %v118 = vld [vmem:[#allocation2 + $0xec] sm:$0xf]
    %v119 = vld [vmem:[#allocation2 + $0xf0] sm:$0xf]
    %v120 = vld [vmem:[#allocation2 + $0xf4] sm:$0xf]
    %v121 = vld [vmem:[#allocation2 + $0xf8] sm:$0xf]
    %v122 = vld [vmem:[#allocation2 + $0xfc] sm:$0xf]
    %v123 = vld [vmem:[#allocation2 + $0x100] sm:$0xf]
    %v124 = vld [vmem:[#allocation2 + $0x104] sm:$0xf]
    %v125 = vld [vmem:[#allocation2 + $0x108] sm:$0xf]
    %v126 = vld [vmem:[#allocation2 + $0x10c] sm:$0xf]
    %v127 = vld [vmem:[#allocation2 + $0x110] sm:$0xf]
    %v128 = vld [vmem:[#allocation2 + $0x114] sm:$0xf]
    %v129 = vld [vmem:[#allocation2 + $0x118] sm:$0xf]
    %v130 = vld [vmem:[#allocation2 + $0x11c] sm:$0xf]
    %v131 = vld [vmem:[#allocation2 + $0x120] sm:$0xf]
    %v132 = vld [vmem:[#allocation2 + $0x124] sm:$0xf]
    %v133 = vld [vmem:[#allocation2 + $0x128] sm:$0xf]
    %v134 = vld [vmem:[#allocation2 + $0x12c] sm:$0xf]
    %v135 = vld [vmem:[#allocation2 + $0x130] sm:$0xf]
    %v136 = vld [vmem:[#allocation2 + $0x134] sm:$0xf]
    %v137 = vld [vmem:[#allocation2 + $0x138] sm:$0xf]
    %v138 = vld [vmem:[#allocation2 + $0x13c] sm:$0xf]
    %v139 = vld [vmem:[#allocation2 + $0x140] sm:$0xf]
    %v140 = vld [vmem:[#allocation2 + $0x144] sm:$0xf]
    %v141 = vld [vmem:[#allocation2 + $0x148] sm:$0xf]
    %v142 = vld [vmem:[#allocation2 + $0x14c] sm:$0xf]
    %v143 = vld [vmem:[#allocation2 + $0x150] sm:$0xf]
    %v144 = vld [vmem:[#allocation2 + $0x154] sm:$0xf]
    %v145 = vld [vmem:[#allocation2 + $0x158] sm:$0xf]
    %v146 = vld [vmem:[#allocation2 + $0x15c] sm:$0xf]
    %v147 = vld [vmem:[#allocation2 + $0x160] sm:$0xf]
    %v148 = vld [vmem:[#allocation2 + $0x164] sm:$0xf]
    %v149 = vld [vmem:[#allocation2 + $0x168] sm:$0xf]
    %v150 = vld [vmem:[#allocation2 + $0x16c] sm:$0xf]
    %v151 = vld [vmem:[#allocation2 + $0x170] sm:$0xf]
    %v152 = vld [vmem:[#allocation2 + $0x174] sm:$0xf]
    %v153 = vld [vmem:[#allocation2 + $0x178] sm:$0xf]
    %v154 = vld [vmem:[#allocation2 + $0x17c] sm:$0xf]
    %v155 = vld [vmem:[#allocation2 + $0x180] sm:$0xf]
    %v156 = vld [vmem:[#allocation2 + $0x184] sm:$0xf]
    %v157 = vld [vmem:[#allocation2 + $0x188] sm:$0xf]
    %v158 = vld [vmem:[#allocation2 + $0x18c] sm:$0xf]
    %v159 = vld [vmem:[#allocation2 + $0x190] sm:$0xf]
    %v160 = vld [vmem:[#allocation2 + $0x194] sm:$0xf]
    %v161 = vld [vmem:[#allocation2 + $0x198] sm:$0xf]
    %v162 = vld [vmem:[#allocation2 + $0x19c] sm:$0xf]
    %v163 = vld [vmem:[#allocation2 + $0x1a0] sm:$0xf]
    %v164 = vld [vmem:[#allocation2 + $0x1a4] sm:$0xf]
    %v165 = vld [vmem:[#allocation2 + $0x1a8] sm:$0xf]
    %v166 = vld [vmem:[#allocation2 + $0x1ac] sm:$0xf]
    %v167 = vld [vmem:[#allocation2 + $0x1b0] sm:$0xf]
    %v168 = vld [vmem:[#allocation2 + $0x1b4] sm:$0xf]
    %v169 = vld [vmem:[#allocation2 + $0x1b8] sm:$0xf]
    %v170 = vld [vmem:[#allocation2 + $0x1bc] sm:$0xf]
    %v171 = vld [vmem:[#allocation2 + $0x1c0] sm:$0xf]
    %v172 = vld [vmem:[#allocation2 + $0x1c4] sm:$0xf]
    %v173 = vld [vmem:[#allocation2 + $0x1c8] sm:$0xf]
    %v174 = vld [vmem:[#allocation2 + $0x1cc] sm:$0xf]
    %v175 = vld [vmem:[#allocation2 + $0x1d0] sm:$0xf]
    %v176 = vld [vmem:[#allocation2 + $0x1d4] sm:$0xf]
    %v177 = vld [vmem:[#allocation2 + $0x1d8] sm:$0xf]
    %v178 = vld [vmem:[#allocation2 + $0x1dc] sm:$0xf]
    %v179 = vld [vmem:[#allocation2 + $0x1e0] sm:$0xf]
    %v180 = vld [vmem:[#allocation2 + $0x1e4] sm:$0xf]
    %v181 = vld [vmem:[#allocation2 + $0x1e8] sm:$0xf]
    %v182 = vld [vmem:[#allocation2 + $0x1ec] sm:$0xf]
    %v183 = vld [vmem:[#allocation2 + $0x1f0] sm:$0xf]
    %v184 = vld [vmem:[#allocation2 + $0x1f4] sm:$0xf]
    %v185 = vld [vmem:[#allocation2 + $0x1f8] sm:$0xf]
    %v186 = vld [vmem:[#allocation2 + $0x1fc] sm:$0xf]
    %v187 = vld [vmem:[%s2] sm:$0x1]
    %v189 = vlaneseq
    %v190 = vshrl.u32 %v189, 7
    %v191 = vsub.s32 0, %v190
    %v192 = vrot.slane %v187, %v191
    %v322 = vunpack.c.l.b16 %v59
    %v323 = vunpack.c.l.b16 %v60
    %v324 = vunpack.c.l.b16 %v61
    %v325 = vunpack.c.l.b16 %v62
    %v326 = vunpack.c.l.b16 %v63
    %v327 = vunpack.c.l.b16 %v64
    %v328 = vunpack.c.l.b16 %v65
    %v329 = vunpack.c.l.b16 %v66
    %v330 = vunpack.c.l.b16 %v67
    %v331 = vunpack.c.l.b16 %v68
    %v332 = vunpack.c.l.b16 %v69
    %v333 = vunpack.c.l.b16 %v70
    %v334 = vunpack.c.l.b16 %v71
    %v335 = vunpack.c.l.b16 %v72
    %v336 = vunpack.c.l.b16 %v73
    %v337 = vunpack.c.l.b16 %v74
    %v338 = vunpack.c.l.b16 %v75
    %v339 = vunpack.c.l.b16 %v76
    %v340 = vunpack.c.l.b16 %v77
    %v341 = vunpack.c.l.b16 %v78
    %v342 = vunpack.c.l.b16 %v79
    %v343 = vunpack.c.l.b16 %v80
    %v344 = vunpack.c.l.b16 %v81
    %v345 = vunpack.c.l.b16 %v82
    %v346 = vunpack.c.l.b16 %v83
    %v347 = vunpack.c.l.b16 %v84
    %v348 = vunpack.c.l.b16 %v85
    %v349 = vunpack.c.l.b16 %v86
    %v350 = vunpack.c.l.b16 %v87
    %v351 = vunpack.c.l.b16 %v88
    %v352 = vunpack.c.l.b16 %v89
    %v353 = vunpack.c.l.b16 %v90
    %v354 = vunpack.c.l.b16 %v91
    %v355 = vunpack.c.l.b16 %v92
    %v356 = vunpack.c.l.b16 %v93
    %v357 = vunpack.c.l.b16 %v94
    %v358 = vunpack.c.l.b16 %v95
    %v359 = vunpack.c.l.b16 %v96
    %v360 = vunpack.c.l.b16 %v97
    %v361 = vunpack.c.l.b16 %v98
    %v362 = vunpack.c.l.b16 %v99
    %v363 = vunpack.c.l.b16 %v100
    %v364 = vunpack.c.l.b16 %v101
    %v365 = vunpack.c.l.b16 %v102
    %v366 = vunpack.c.l.b16 %v103
    %v367 = vunpack.c.l.b16 %v104
    %v368 = vunpack.c.l.b16 %v105
    %v369 = vunpack.c.l.b16 %v106
    %v370 = vunpack.c.l.b16 %v107
    %v371 = vunpack.c.l.b16 %v108
    %v372 = vunpack.c.l.b16 %v109
    %v373 = vunpack.c.l.b16 %v110
    %v374 = vunpack.c.l.b16 %v111
    %v375 = vunpack.c.l.b16 %v112
    %v376 = vunpack.c.l.b16 %v113
    %v377 = vunpack.c.l.b16 %v114
    %v378 = vunpack.c.l.b16 %v115
    %v379 = vunpack.c.l.b16 %v116
    %v380 = vunpack.c.l.b16 %v117
    %v381 = vunpack.c.l.b16 %v118
    %v382 = vunpack.c.l.b16 %v119
    %v383 = vunpack.c.l.b16 %v120
    %v384 = vunpack.c.l.b16 %v121
    %v385 = vunpack.c.l.b16 %v122
    %v386 = vunpack.c.l.b16 %v123
    %v387 = vunpack.c.l.b16 %v124
    %v388 = vunpack.c.l.b16 %v125
    %v389 = vunpack.c.l.b16 %v126
    %v390 = vunpack.c.l.b16 %v127
    %v391 = vunpack.c.l.b16 %v128
    %v392 = vunpack.c.l.b16 %v129
    %v393 = vunpack.c.l.b16 %v130
    %v394 = vunpack.c.l.b16 %v131
    %v395 = vunpack.c.l.b16 %v132
    %v396 = vunpack.c.l.b16 %v133
    %v397 = vunpack.c.l.b16 %v134
    %v398 = vunpack.c.l.b16 %v135
    %v399 = vunpack.c.l.b16 %v136
    %v400 = vunpack.c.l.b16 %v137
    %v401 = vunpack.c.l.b16 %v138
    %v402 = vunpack.c.l.b16 %v139
    %v403 = vunpack.c.l.b16 %v140
    %v404 = vunpack.c.l.b16 %v141
    %v405 = vunpack.c.l.b16 %v142
    %v406 = vunpack.c.l.b16 %v143
    %v407 = vunpack.c.l.b16 %v144
    %v408 = vunpack.c.l.b16 %v145
    %v409 = vunpack.c.l.b16 %v146
    %v410 = vunpack.c.l.b16 %v147
    %v411 = vunpack.c.l.b16 %v148
    %v412 = vunpack.c.l.b16 %v149
    %v413 = vunpack.c.l.b16 %v150
    %v414 = vunpack.c.l.b16 %v151
    %v415 = vunpack.c.l.b16 %v152
    %v416 = vunpack.c.l.b16 %v153
    %v417 = vunpack.c.l.b16 %v154
    %v418 = vunpack.c.l.b16 %v155
    %v419 = vunpack.c.l.b16 %v156
    %v420 = vunpack.c.l.b16 %v157
    %v421 = vunpack.c.l.b16 %v158
    %v422 = vunpack.c.l.b16 %v159
    %v423 = vunpack.c.l.b16 %v160
    %v424 = vunpack.c.l.b16 %v161
    %v425 = vunpack.c.l.b16 %v162
    %v426 = vunpack.c.l.b16 %v163
    %v427 = vunpack.c.l.b16 %v164
    %v428 = vunpack.c.l.b16 %v165
    %v429 = vunpack.c.l.b16 %v166
    %v430 = vunpack.c.l.b16 %v167
    %v431 = vunpack.c.l.b16 %v168
    %v432 = vunpack.c.l.b16 %v169
    %v433 = vunpack.c.l.b16 %v170
    %v434 = vunpack.c.l.b16 %v171
    %v435 = vunpack.c.l.b16 %v172
    %v436 = vunpack.c.l.b16 %v173
    %v437 = vunpack.c.l.b16 %v174
    %v438 = vunpack.c.l.b16 %v175
    %v439 = vunpack.c.l.b16 %v176
    %v440 = vunpack.c.l.b16 %v177
    %v441 = vunpack.c.l.b16 %v178
    %v442 = vunpack.c.l.b16 %v179
    %v443 = vunpack.c.l.b16 %v180
    %v444 = vunpack.c.l.b16 %v181
    %v445 = vunpack.c.l.b16 %v182
    %v446 = vunpack.c.l.b16 %v183
    %v447 = vunpack.c.l.b16 %v184
    %v448 = vunpack.c.l.b16 %v185
    %v449 = vunpack.c.l.b16 %v186
    %v450 = vpack.c.b16 %v323, %v322
    %v451 = vpack.c.b16 %v325, %v324
    %v452 = vpack.c.b16 %v327, %v326
    %v453 = vpack.c.b16 %v329, %v328
    %v454 = vpack.c.b16 %v331, %v330
    %v455 = vpack.c.b16 %v333, %v332
    %v456 = vpack.c.b16 %v335, %v334
    %v457 = vpack.c.b16 %v337, %v336
    %v458 = vpack.c.b16 %v339, %v338
    %v459 = vpack.c.b16 %v341, %v340
    %v460 = vpack.c.b16 %v343, %v342
    %v461 = vpack.c.b16 %v345, %v344
    %v462 = vpack.c.b16 %v347, %v346
    %v463 = vpack.c.b16 %v349, %v348
    %v464 = vpack.c.b16 %v351, %v350
    %v465 = vpack.c.b16 %v353, %v352
    %v466 = vpack.c.b16 %v355, %v354
    %v467 = vpack.c.b16 %v357, %v356
    %v468 = vpack.c.b16 %v359, %v358
    %v469 = vpack.c.b16 %v361, %v360
    %v470 = vpack.c.b16 %v363, %v362
    %v471 = vpack.c.b16 %v365, %v364
    %v472 = vpack.c.b16 %v367, %v366
    %v473 = vpack.c.b16 %v369, %v368
    %v474 = vpack.c.b16 %v371, %v370
    %v475 = vpack.c.b16 %v373, %v372
    %v476 = vpack.c.b16 %v375, %v374
    %v477 = vpack.c.b16 %v377, %v376
    %v478 = vpack.c.b16 %v379, %v378
    %v479 = vpack.c.b16 %v381, %v380
    %v480 = vpack.c.b16 %v383, %v382
    %v481 = vpack.c.b16 %v385, %v384
    %v482 = vpack.c.b16 %v387, %v386
    %v483 = vpack.c.b16 %v389, %v388
    %v484 = vpack.c.b16 %v391, %v390
    %v485 = vpack.c.b16 %v393, %v392
    %v486 = vpack.c.b16 %v395, %v394
    %v487 = vpack.c.b16 %v397, %v396
    %v488 = vpack.c.b16 %v399, %v398
    %v489 = vpack.c.b16 %v401, %v400
    %v490 = vpack.c.b16 %v403, %v402
    %v491 = vpack.c.b16 %v405, %v404
    %v492 = vpack.c.b16 %v407, %v406
    %v493 = vpack.c.b16 %v409, %v408
    %v494 = vpack.c.b16 %v411, %v410
    %v495 = vpack.c.b16 %v413, %v412
    %v496 = vpack.c.b16 %v415, %v414
    %v497 = vpack.c.b16 %v417, %v416
    %v498 = vpack.c.b16 %v419, %v418
    %v499 = vpack.c.b16 %v421, %v420
    %v500 = vpack.c.b16 %v423, %v422
    %v501 = vpack.c.b16 %v425, %v424
    %v502 = vpack.c.b16 %v427, %v426
    %v503 = vpack.c.b16 %v429, %v428
    %v504 = vpack.c.b16 %v431, %v430
    %v505 = vpack.c.b16 %v433, %v432
    %v506 = vpack.c.b16 %v435, %v434
    %v507 = vpack.c.b16 %v437, %v436
    %v508 = vpack.c.b16 %v439, %v438
    %v509 = vpack.c.b16 %v441, %v440
    %v510 = vpack.c.b16 %v443, %v442
    %v511 = vpack.c.b16 %v445, %v444
    %v512 = vpack.c.b16 %v447, %v446
    %v513 = vpack.c.b16 %v449, %v448
    %578 = vmatprep.subr.bf16.mxu0 0
    %579 = vmatpush1.bf16.msra.mxu0 %v450
    %580 = vmatprep.subr.bf16.mxu0 0
    %581 = vmatpush1.bf16.msra.mxu0 %v451
    %582 = vmatprep.subr.bf16.mxu0 0
    %583 = vmatpush1.bf16.msra.mxu0 %v452
    %584 = vmatprep.subr.bf16.mxu0 0
    %585 = vmatpush1.bf16.msra.mxu0 %v453
    %586 = vmatprep.subr.bf16.mxu0 0
    %587 = vmatpush1.bf16.msra.mxu0 %v454
    %588 = vmatprep.subr.bf16.mxu0 0
    %589 = vmatpush1.bf16.msra.mxu0 %v455
    %590 = vmatprep.subr.bf16.mxu0 0
    %591 = vmatpush1.bf16.msra.mxu0 %v456
    %592 = vmatprep.subr.bf16.mxu0 0
    %593 = vmatpush1.bf16.msra.mxu0 %v457
    %594 = vmatprep.subr.bf16.mxu0 0
    %595 = vmatpush1.bf16.msra.mxu0 %v458
    %596 = vmatprep.subr.bf16.mxu0 0
    %597 = vmatpush1.bf16.msra.mxu0 %v459
    %598 = vmatprep.subr.bf16.mxu0 0
    %599 = vmatpush1.bf16.msra.mxu0 %v460
    %600 = vmatprep.subr.bf16.mxu0 0
    %601 = vmatpush1.bf16.msra.mxu0 %v461
    %602 = vmatprep.subr.bf16.mxu0 0
    %603 = vmatpush1.bf16.msra.mxu0 %v462
    %604 = vmatprep.subr.bf16.mxu0 0
    %605 = vmatpush1.bf16.msra.mxu0 %v463
    %606 = vmatprep.subr.bf16.mxu0 0
    %607 = vmatpush1.bf16.msra.mxu0 %v464
    %608 = vmatprep.subr.bf16.mxu0 0
    %609 = vmatpush1.bf16.msra.mxu0 %v465
    %610 = vmatprep.mubr.bf16.mxu0 %v52
    %611 = vmatmul.mubr.bf16.gmra.mrb[0].mxu0 %v51
    %v612 = vpop.f32.mrb[0].mxu0
    %v613 = vadd.f32 %v192, %v612
    %v614 = vpop.f32.mrb[0].mxu0
    %v615 = vpop.f32.mrb[0].mxu0
    %v616 = vadd.f32 %v192, %v615
    %v617 = vpop.f32.mrb[0].mxu0
    %618 = vdwg.mxu0
    %619 = vmatprep.subr.bf16.mxu0 0
    %620 = vmatpush1.bf16.msra.mxu0 %v466
    %621 = vmatprep.subr.bf16.mxu0 0
    %622 = vmatpush1.bf16.msra.mxu0 %v467
    %623 = vmatprep.subr.bf16.mxu0 0
    %624 = vmatpush1.bf16.msra.mxu0 %v468
    %625 = vmatprep.subr.bf16.mxu0 0
    %626 = vmatpush1.bf16.msra.mxu0 %v469
    %627 = vmatprep.subr.bf16.mxu0 0
    %628 = vmatpush1.bf16.msra.mxu0 %v470
    %629 = vmatprep.subr.bf16.mxu0 0
    %630 = vmatpush1.bf16.msra.mxu0 %v471
    %631 = vmatprep.subr.bf16.mxu0 0
    %632 = vmatpush1.bf16.msra.mxu0 %v472
    %633 = vmatprep.subr.bf16.mxu0 0
    %634 = vmatpush1.bf16.msra.mxu0 %v473
    %635 = vmatprep.subr.bf16.mxu0 0
    %636 = vmatpush1.bf16.msra.mxu0 %v474
    %637 = vmatprep.subr.bf16.mxu0 0
    %638 = vmatpush1.bf16.msra.mxu0 %v475
    %639 = vmatprep.subr.bf16.mxu0 0
    %640 = vmatpush1.bf16.msra.mxu0 %v476
    %641 = vmatprep.subr.bf16.mxu0 0
    %642 = vmatpush1.bf16.msra.mxu0 %v477
    %643 = vmatprep.subr.bf16.mxu0 0
    %644 = vmatpush1.bf16.msra.mxu0 %v478
    %645 = vmatprep.subr.bf16.mxu0 0
    %646 = vmatpush1.bf16.msra.mxu0 %v479
    %647 = vmatprep.subr.bf16.mxu0 0
    %648 = vmatpush1.bf16.msra.mxu0 %v480
    %649 = vmatprep.subr.bf16.mxu0 0
    %650 = vmatpush1.bf16.msra.mxu0 %v481
    %651 = vmatprep.mubr.bf16.mxu0 %v54
    %652 = vmatmul.mubr.bf16.gmra.mrb[0].mxu0 %v53
    %v653 = vpop.f32.mrb[0].mxu0
    %v654 = vadd.f32 %v613, %v653
    %v655 = vpop.f32.mrb[0].mxu0
    %v656 = vpop.f32.mrb[0].mxu0
    %v657 = vadd.f32 %v616, %v656
    %v658 = vpop.f32.mrb[0].mxu0
    %659 = vdwg.mxu0
    %660 = vmatprep.subr.bf16.mxu0 0
    %661 = vmatpush1.bf16.msra.mxu0 %v482
    %662 = vmatprep.subr.bf16.mxu0 0
    %663 = vmatpush1.bf16.msra.mxu0 %v483
    %664 = vmatprep.subr.bf16.mxu0 0
    %665 = vmatpush1.bf16.msra.mxu0 %v484
    %666 = vmatprep.subr.bf16.mxu0 0
    %667 = vmatpush1.bf16.msra.mxu0 %v485
    %668 = vmatprep.subr.bf16.mxu0 0
    %669 = vmatpush1.bf16.msra.mxu0 %v486
    %670 = vmatprep.subr.bf16.mxu0 0
    %671 = vmatpush1.bf16.msra.mxu0 %v487
    %672 = vmatprep.subr.bf16.mxu0 0
    %673 = vmatpush1.bf16.msra.mxu0 %v488
    %674 = vmatprep.subr.bf16.mxu0 0
    %675 = vmatpush1.bf16.msra.mxu0 %v489
    %676 = vmatprep.subr.bf16.mxu0 0
    %677 = vmatpush1.bf16.msra.mxu0 %v490
    %678 = vmatprep.subr.bf16.mxu0 0
    %679 = vmatpush1.bf16.msra.mxu0 %v491
    %680 = vmatprep.subr.bf16.mxu0 0
    %681 = vmatpush1.bf16.msra.mxu0 %v492
    %682 = vmatprep.subr.bf16.mxu0 0
    %683 = vmatpush1.bf16.msra.mxu0 %v493
    %684 = vmatprep.subr.bf16.mxu0 0
    %685 = vmatpush1.bf16.msra.mxu0 %v494
    %686 = vmatprep.subr.bf16.mxu0 0
    %687 = vmatpush1.bf16.msra.mxu0 %v495
    %688 = vmatprep.subr.bf16.mxu0 0
    %689 = vmatpush1.bf16.msra.mxu0 %v496
    %690 = vmatprep.subr.bf16.mxu0 0
    %691 = vmatpush1.bf16.msra.mxu0 %v497
    %692 = vmatprep.mubr.bf16.mxu0 %v56
    %693 = vmatmul.mubr.bf16.gmra.mrb[0].mxu0 %v55
    %v694 = vpop.f32.mrb[0].mxu0
    %v695 = vadd.f32 %v654, %v694
    %v696 = vpop.f32.mrb[0].mxu0
    %v697 = vpop.f32.mrb[0].mxu0
    %v698 = vadd.f32 %v657, %v697
    %v699 = vpop.f32.mrb[0].mxu0
    %700 = vdwg.mxu0
    %701 = vmatprep.subr.bf16.mxu0 0
    %702 = vmatpush1.bf16.msra.mxu0 %v498
    %703 = vmatprep.subr.bf16.mxu0 0
    %704 = vmatpush1.bf16.msra.mxu0 %v499
    %705 = vmatprep.subr.bf16.mxu0 0
    %706 = vmatpush1.bf16.msra.mxu0 %v500
    %707 = vmatprep.subr.bf16.mxu0 0
    %708 = vmatpush1.bf16.msra.mxu0 %v501
    %709 = vmatprep.subr.bf16.mxu0 0
    %710 = vmatpush1.bf16.msra.mxu0 %v502
    %711 = vmatprep.subr.bf16.mxu0 0
    %712 = vmatpush1.bf16.msra.mxu0 %v503
    %713 = vmatprep.subr.bf16.mxu0 0
    %714 = vmatpush1.bf16.msra.mxu0 %v504
    %715 = vmatprep.subr.bf16.mxu0 0
    %716 = vmatpush1.bf16.msra.mxu0 %v505
    %717 = vmatprep.subr.bf16.mxu0 0
    %718 = vmatpush1.bf16.msra.mxu0 %v506
    %719 = vmatprep.subr.bf16.mxu0 0
    %720 = vmatpush1.bf16.msra.mxu0 %v507
    %721 = vmatprep.subr.bf16.mxu0 0
    %722 = vmatpush1.bf16.msra.mxu0 %v508
    %723 = vmatprep.subr.bf16.mxu0 0
    %724 = vmatpush1.bf16.msra.mxu0 %v509
    %725 = vmatprep.subr.bf16.mxu0 0
    %726 = vmatpush1.bf16.msra.mxu0 %v510
    %727 = vmatprep.subr.bf16.mxu0 0
    %728 = vmatpush1.bf16.msra.mxu0 %v511
    %729 = vmatprep.subr.bf16.mxu0 0
    %730 = vmatpush1.bf16.msra.mxu0 %v512
    %731 = vmatprep.subr.bf16.mxu0 0
    %732 = vmatpush1.bf16.msra.mxu0 %v513
    %733 = vmatprep.mubr.bf16.mxu0 %v58
    %734 = vmatmul.mubr.bf16.gmra.mrb[0].mxu0 %v57
    %v735 = vpop.f32.mrb[0].mxu0
    %v736 = vadd.f32 %v695, %v735
    %v737 = vpop.f32.mrb[0].mxu0
    %v738 = vpop.f32.mrb[0].mxu0
    %v739 = vadd.f32 %v698, %v738
    %v740 = vpop.f32.mrb[0].mxu0
    %741 = vdwg.mxu0
    %v742 = vmax.f32 %v736, 0.0
    %v743 = vmax.f32 %v739, 0.0
    %v744 = vld [vmem:[%s3] sm:$0xff]
    %v745 = vld [vmem:[%s3 + $0x8] sm:$0xff]
    %v746 = vld [vmem:[%s3 + $0x10] sm:$0xff]
    %v747 = vld [vmem:[%s3 + $0x18] sm:$0xff]
    %v748 = vld [vmem:[%s3 + $0x20] sm:$0xff]
    %v749 = vld [vmem:[%s3 + $0x28] sm:$0xff]
    %v750 = vld [vmem:[%s3 + $0x30] sm:$0xff]
    %v751 = vld [vmem:[%s3 + $0x38] sm:$0xff]
    %v752 = vld [vmem:[%s3 + $0x40] sm:$0xff]
    %v753 = vld [vmem:[%s3 + $0x48] sm:$0xff]
    %v754 = vld [vmem:[%s3 + $0x50] sm:$0xff]
    %v755 = vld [vmem:[%s3 + $0x58] sm:$0xff]
    %v756 = vld [vmem:[%s3 + $0x60] sm:$0xff]
    %v757 = vld [vmem:[%s3 + $0x68] sm:$0xff]
    %v758 = vld [vmem:[%s3 + $0x70] sm:$0xff]
    %v759 = vld [vmem:[%s3 + $0x78] sm:$0xff]
    %v760 = vld [vmem:[%s4] sm:$0x1]
    %v762 = vlaneseq
    %v763 = vshrl.u32 %v762, 7
    %v764 = vsub.s32 0, %v763
    %v765 = vrot.slane %v760, %v764
    %767 = vmatprep.subr.mxu0 0.0
    %768 = vmatpush1.msra.mxu0 %v744
    %769 = vmatprep.subr.mxu0 0.0
    %770 = vmatpush1.msra.mxu0 %v745
    %771 = vmatprep.subr.mxu0 0.0
    %772 = vmatpush1.msra.mxu0 %v746
    %773 = vmatprep.subr.mxu0 0.0
    %774 = vmatpush1.msra.mxu0 %v747
    %775 = vmatprep.subr.mxu0 0.0
    %776 = vmatpush1.msra.mxu0 %v748
    %777 = vmatprep.subr.mxu0 0.0
    %778 = vmatpush1.msra.mxu0 %v749
    %779 = vmatprep.subr.mxu0 0.0
    %780 = vmatpush1.msra.mxu0 %v750
    %781 = vmatprep.subr.mxu0 0.0
    %782 = vmatpush1.msra.mxu0 %v751
    %783 = vmatprep.subr.mxu0 0.0
    %784 = vmatpush1.msra.mxu0 %v752
    %785 = vmatprep.subr.mxu0 0.0
    %786 = vmatpush1.msra.mxu0 %v753
    %787 = vmatprep.subr.mxu0 0.0
    %788 = vmatpush1.msra.mxu0 %v754
    %789 = vmatprep.subr.mxu0 0.0
    %790 = vmatpush1.msra.mxu0 %v755
    %791 = vmatprep.subr.mxu0 0.0
    %792 = vmatpush1.msra.mxu0 %v756
    %793 = vmatprep.subr.mxu0 0.0
    %794 = vmatpush1.msra.mxu0 %v757
    %795 = vmatprep.subr.mxu0 0.0
    %796 = vmatpush1.msra.mxu0 %v758
    %797 = vmatprep.subr.mxu0 0.0
    %798 = vmatpush1.msra.mxu0 %v759
    %799 = vmatprep.subr.mxu0 0.0
    %800 = vmatpush1.msra.mxu0 0.0
    %801 = vmatprep.subr.mxu0 0.0
    %802 = vmatpush1.msra.mxu0 0.0
    %803 = vmatprep.subr.mxu0 0.0
    %804 = vmatpush1.msra.mxu0 0.0
    %805 = vmatprep.subr.mxu0 0.0
    %806 = vmatpush1.msra.mxu0 0.0
    %807 = vmatprep.subr.mxu0 0.0
    %808 = vmatpush1.msra.mxu0 0.0
    %809 = vmatprep.subr.mxu0 0.0
    %810 = vmatpush1.msra.mxu0 0.0
    %811 = vmatprep.subr.mxu0 0.0
    %812 = vmatpush1.msra.mxu0 0.0
    %813 = vmatprep.subr.mxu0 0.0
    %814 = vmatpush1.msra.mxu0 0.0
    %815 = vmatprep.subr.mxu0 0.0
    %816 = vmatpush1.msra.mxu0 0.0
    %817 = vmatprep.subr.mxu0 0.0
    %818 = vmatpush1.msra.mxu0 0.0
    %819 = vmatprep.subr.mxu0 0.0
    %820 = vmatpush1.msra.mxu0 0.0
    %821 = vmatprep.subr.mxu0 0.0
    %822 = vmatpush1.msra.mxu0 0.0
    %823 = vmatprep.subr.mxu0 0.0
    %824 = vmatpush1.msra.mxu0 0.0
    %825 = vmatprep.subr.mxu0 0.0
    %826 = vmatpush1.msra.mxu0 0.0
    %827 = vmatprep.subr.mxu0 0.0
    %828 = vmatpush1.msra.mxu0 0.0
    %829 = vmatprep.subr.mxu0 0.0
    %830 = vmatpush1.msra.mxu0 0.0
    %831 = vmatprep.mubr.f32.mxu0 0.0
    %832 = vmatmul.mubr.f32.gmra.mrb[0].mxu0 %v742
    %v833 = vpop.f32.mrb[0].mxu0
    %v834 = vadd.f32 %v765, %v833
    %v835 = vpop.f32.mrb[0].mxu0
    %836 = vmatprep.mubr.f32.mxu0 0.0
    %837 = vmatmul.mubr.f32.gmra.mrb[0].mxu0 %v743
    %v838 = vpop.f32.mrb[0].mxu0
    %v839 = vadd.f32 %v765, %v838
    %v840 = vpop.f32.mrb[0].mxu0
    %841 = vdwg.mxu0
    %842 = vmax.xlane.f32.xlu0 %v834
    %v843 = vpop.xlane.xlu0 %842
    %844 = vmax.xlane.f32.xlu0 %v839
    %v845 = vpop.xlane.xlu0 %844
    %v846 = vsub.f32 %v834, %v843
    %v847 = vsub.f32 %v839, %v845
    %v848 = vmul.f32 %v846, 1.442695
    %v849 = vpow.pop %v848
    %v850 = vmul.f32 %v847, 1.442695
    %v851 = vpow.pop %v850
    %852 = vadd.xlane.f32.xlu0 %v849
    %v853 = vpop.xlane.xlu0 %852
    %854 = vadd.xlane.f32.xlu0 %v851
    %v855 = vpop.xlane.xlu0 %854
    %v856 = vrcp.pop %v853
    %v857 = vrcp.pop %v855
    %v858 = vmul.f32 %v849, %v856
    %v859 = vmul.f32 %v851, %v857
    %860 = vst [vmem:[%s5] sm:$0xff] %v858
    %861 = vst [vmem:[%s5 + $0x8] sm:$0xff] %v859
    // Predicated region
    $region26: #{mlp_forward.1} parent=1 // pred_check
      _
    $region27: #{mlp_forward.1} parent=1 // pred_check_branch
      %863 = sbr.rel (0) target = $region29
    $region28: #{mlp_forward.1} parent=1 // pred_region
      _
    $region29: #{mlp_forward.1} parent=1 // pred_fallthru
      _
    // Predicated region
    $region30: #{mlp_forward.1} parent=1 // pred_check
      _
    $region31: #{mlp_forward.1} parent=1 // pred_check_branch
      %865 = sbr.rel (0) target = $region33
    $region32: #{mlp_forward.1} parent=1 // pred_region
      _
    $region33: #{mlp_forward.1} parent=1 // pred_fallthru
      _
    %866 = vsyncpa [#allocation3], 1

</llo_original>
